<compile_context>
chip_gen: v7x
topology: tpu7x:2x2x1
jax: 0.10.0
libtpu: 0.0.40
codegen_flags: <defaults>
</compile_context>

<pallas_src>
import functools

import jax
import jax.numpy as jnp
from jax.experimental import pallas as pl
from jax.experimental.pallas import tpu as pltpu

BN_EPS = 1e-5
LEAKY_SLOPE = 0.01  # PyTorch nn.LeakyReLU default negative_slope


def _mtlp_kernel(z_dim, matmul_dtype,
                 x_ref,        # (block_b, h_dim)   native layout, caller dtype
                 w_sh_ref,     # (z_dim, h_dim)     BN-folded, matmul_dtype
                 w123_ref,     # (3*z_dim, z_dim)   matmul_dtype
                 vec_ref,      # (z_dim, 8) f32: [b_sh', b1, b2, b3, w4, b4@row0, 0, 0]
                 out_ref):     # (1, block_b) f32, lane-dense
    md = matmul_dtype
    zd = z_dim

    def lrelu(v):
        return jnp.maximum(v, LEAKY_SLOPE * v)

    # Sh + folded eval-mode BatchNorm; Dropout is identity (eval); then ReLU.
    # Contract h_dim of BOTH operands: (z, h) x (bb, h) -> (z, bb).  The RHS
    # "transpose" is handled on-chip (hidden under DMA/MXU); x never makes an
    # extra HBM round trip.
    z = jax.lax.dot_general(
        w_sh_ref[...], x_ref[...].astype(md),
        dimension_numbers=(((1,), (1,)), ((), ())),
        preferred_element_type=jnp.float32)
    z = jnp.maximum(z + vec_ref[:, 0:1], 0.0)                        # (z_dim, bb)

    # Predictor hidden layers (weights stacked along rows; static aligned slices).
    h = lrelu(jnp.dot(w123_ref[0 * zd:1 * zd, :], z.astype(md),
                      preferred_element_type=jnp.float32) + vec_ref[:, 1:2])
    h = lrelu(jnp.dot(w123_ref[1 * zd:2 * zd, :], h.astype(md),
                      preferred_element_type=jnp.float32) + vec_ref[:, 2:3])
    h = lrelu(jnp.dot(w123_ref[2 * zd:3 * zd, :], h.astype(md),
                      preferred_element_type=jnp.float32) + vec_ref[:, 3:4])

    # Final Linear(z_dim -> 1) as elementwise-mul + sublane (XLU) reduction so the
    # result is produced directly in lane-dense (1, block_b) form.
    y = jnp.sum(h * vec_ref[:, 4:5], axis=0, keepdims=True) + vec_ref[0:1, 5:6]

    # Sigmoid: exp on the EUP; approximate reciprocal only when matmuls are bf16.
    approx = jnp.dtype(md) != jnp.dtype(jnp.float32)
    out_ref[...] = pl.reciprocal(1.0 + jnp.exp(-y), approx=approx).astype(out_ref.dtype)


def _rup(n, m):
    return ((n + m - 1) // m) * m


def _device_info():
    """(vmem_budget_bytes, tensorcores_per_device, is_v5e) for the default device."""
    kind = ""
    try:
        kind = jax.devices()[0].device_kind.lower()
    except Exception:  # pragma: no cover
        pass
    is_v7 = ("v7" in kind) or ("tpu7" in kind)
    is_v5e = ("v5 lite" in kind) or ("v5e" in kind) or ("v5lite" in kind)
    if is_v7:
        return 44 * 1024 * 1024, 2, False   # 64 MiB physical VMEM, 2 TensorCores
    if is_v5e:
        return 80 * 1024 * 1024, 1, True    # 128 MiB physical, single vst slot/bundle
    return 96 * 1024 * 1024, 1, False       # v4 / v5p / v6e: 128 MiB physical


def _vmem_bytes(bb, h_dim, z_dim, x_bytes, md_bytes):
    """Conservative VMEM footprint estimate for one grid step with batch tile bb."""
    x_sub = 8 * max(1, 4 // x_bytes)         # sublane packing multiple for x dtype
    md_sub = 8 * max(1, 4 // md_bytes)
    x_blk = 2 * _rup(bb, x_sub) * _rup(h_dim, 128) * x_bytes          # double-buffered
    out_blk = 2 * 8 * _rup(bb, 128) * 4                               # (1,bb) pads to 8 sublanes
    w_blk = 2 * (_rup(z_dim, md_sub) * _rup(h_dim, 128)
                 + _rup(3 * z_dim, md_sub) * _rup(z_dim, 128)) * md_bytes
    vec_blk = 2 * _rup(z_dim, 8) * 128 * 4
    interm = (_rup(h_dim, md_sub) * _rup(bb, 128) * md_bytes          # transposed-x operand
              + 3 * _rup(z_dim, 8) * _rup(bb, 128) * 4)               # z / live h chain (f32)
    return x_blk + out_blk + w_blk + vec_blk + interm


def _choose_block_b(B, h_dim, z_dim, x_bytes, md_bytes, budget, num_tc, is_v5e):
    """Batch tile: whole batch in one step when it fits (single-TC parts), else the
    largest 128-aligned block inside the VMEM budget; on v7x (2 TCs) require >= 2
    grid steps so both TensorCores get work."""
    def fits(bb):
        return _vmem_bytes(bb, h_dim, z_dim, x_bytes, md_bytes) <= budget

    if num_tc == 1:
        if fits(B):
            return B              # one grid step: minimal per-step overhead
    else:
        if B <= 256:
            return B              # too small to be worth splitting across TCs
    bb = 32768 if is_v5e else 65536
    while bb >= 128:
        if fits(bb) and (num_tc == 1 or pl.cdiv(B, bb) >= 2):
            return bb
        bb //= 2
    return 128


@functools.partial(jax.jit, static_argnames=("block_b", "matmul_dtype"))
def mtlp_forward(x, params, block_b=None, matmul_dtype=jnp.float32):
    B, h_dim = x.shape
    z_dim = params["w_sh"].shape[0]

    budget, num_tc, is_v5e = _device_info()

    # ---- Fold eval-mode BatchNorm1d into the Sh linear (outside the kernel) ----
    scale = params["gamma"] * jax.lax.rsqrt(params["running_var"] + BN_EPS)   # (z,)
    w_sh_f = (params["w_sh"] * scale[:, None]).astype(matmul_dtype)           # (z, h)
    b_sh_f = (params["b_sh"] - params["running_mean"]) * scale + params["beta"]

    # ---- Pack all small per-feature vectors into ONE (z_dim, 8) tile ----
    vec = jnp.zeros((z_dim, 8), jnp.float32)
    vec = vec.at[:, 0].set(b_sh_f)
    vec = vec.at[:, 1].set(params["b1"])
    vec = vec.at[:, 2].set(params["b2"])
    vec = vec.at[:, 3].set(params["b3"])
    vec = vec.at[:, 4].set(params["w4"][0])
    vec = vec.at[0, 5].set(params["b4"][0])

    # ---- Stack hidden-layer weights: one DMA instead of three ----
    w123 = jnp.concatenate([params["w1"], params["w2"], params["w3"]],
                           axis=0).astype(matmul_dtype)

    if block_b is None:
        block_b = _choose_block_b(B, h_dim, z_dim,
                                  jnp.dtype(x.dtype).itemsize,
                                  jnp.dtype(matmul_dtype).itemsize,
                                  budget, num_tc, is_v5e)
    grid = (pl.cdiv(B, block_b),)

    kernel = functools.partial(_mtlp_kernel, z_dim, matmul_dtype)

    # NOTE: when B % block_b != 0 the last step computes on stale pad lanes; all math
    # stays lane-local (matmuls contract feature dims only, never batch) and the
    # output store is masked, so pad lanes never contaminate valid results.
    out = pl.pallas_call(
        kernel,
        out_shape=jax.ShapeDtypeStruct((1, B), jnp.float32),
        grid_spec=pltpu.PrefetchScalarGridSpec(
            num_scalar_prefetch=0,
            grid=grid,
            in_specs=[
                pl.BlockSpec((block_b, h_dim), lambda i: (i, 0)),     # x, native layout
                pl.BlockSpec((z_dim, h_dim), lambda i: (0, 0)),       # BN-folded Sh weight
                pl.BlockSpec((3 * z_dim, z_dim), lambda i: (0, 0)),   # stacked w1..w3
                pl.BlockSpec((z_dim, 8), lambda i: (0, 0)),           # packed vectors
            ],
            out_specs=pl.BlockSpec((1, block_b), lambda i: (0, i)),   # lane-dense out
        ),
        compiler_params=pltpu.CompilerParams(
            dimension_semantics=("parallel",),
            vmem_limit_bytes=budget,
        ),
    )(x, w_sh_f, w123, vec)

    return out.reshape(B, 1)


def init_params(key, h_dim, z_dim):
    """Parameters in native PyTorch layout: Linear weight = (out_dim, in_dim)."""
    ks = jax.random.split(key, 9)

    def lin(k, fan_in, fan_out):
        bound = 1.0 / jnp.sqrt(fan_in)
        kw, kb = jax.random.split(k)
        w = jax.random.uniform(kw, (fan_out, fan_in), jnp.float32, -bound, bound)
        b = jax.random.uniform(kb, (fan_out,), jnp.float32, -bound, bound)
        return w, b

    w_sh, b_sh = lin(ks[0], h_dim, z_dim)
    w1, b1 = lin(ks[1], z_dim, z_dim)
    w2, b2 = lin(ks[2], z_dim, z_dim)
    w3, b3 = lin(ks[3], z_dim, z_dim)
    w4, b4 = lin(ks[4], z_dim, 1)

    return dict(
        w_sh=w_sh, b_sh=b_sh,
        gamma=jax.random.uniform(ks[5], (z_dim,), jnp.float32, 0.5, 1.5),
        beta=0.1 * jax.random.normal(ks[6], (z_dim,), jnp.float32),
        running_mean=0.1 * jax.random.normal(ks[7], (z_dim,), jnp.float32),
        running_var=jax.random.uniform(ks[8], (z_dim,), jnp.float32, 0.5, 1.5),
        w1=w1, b1=b1, w2=w2, b2=b2, w3=w3, b3=b3, w4=w4, b4=b4,
    )


def mtlp_reference(x, p):
    """Pure-JAX reference with the literal (unfused) PyTorch eval-mode math."""
    z = x @ p["w_sh"].T + p["b_sh"]
    z = (z - p["running_mean"]) / jnp.sqrt(p["running_var"] + BN_EPS) * p["gamma"] + p["beta"]
    z = jnp.maximum(z, 0.0)
    lrelu = lambda v: jnp.where(v > 0, v, LEAKY_SLOPE * v)
    h = lrelu(z @ p["w1"].T + p["b1"])
    h = lrelu(h @ p["w2"].T + p["b2"])
    h = lrelu(h @ p["w3"].T + p["b3"])
    return jax.nn.sigmoid(h @ p["w4"].T + p["b4"])


if __name__ == "__main__":
    key = jax.random.PRNGKey(0)
    kx, kp = jax.random.split(key)

    B, h_dim, z_dim = 16, 32, 32
    x = jax.random.normal(kx, (B, h_dim), jnp.float32)
    params = init_params(kp, h_dim, z_dim)

    # f32 path, small batch.  Tolerance 2e-3 covers possible single-pass bf16 MXU
    # truncation of f32 matmuls on either the kernel or the XLA reference side.
    y = jax.block_until_ready(mtlp_forward(x, params))
    y_ref = mtlp_reference(x, params)
    assert y.shape == (B, 1)
    assert bool(jnp.all(jnp.isfinite(y)))
    assert jnp.allclose(y, y_ref, atol=2e-3, rtol=2e-3), \
        float(jnp.max(jnp.abs(y - y_ref)))

    # Larger, non-128-multiple batch (exercises multi-step grid / ragged last block
    # on v7x; single big block on v5e/v6e).
    B2 = 1000
    x2 = jax.random.normal(jax.random.PRNGKey(1), (B2, h_dim), jnp.float32)
    y2 = jax.block_until_ready(mtlp_forward(x2, params))
    y2_ref = mtlp_reference(x2, params)
    assert y2.shape == (B2, 1)
    assert jnp.allclose(y2, y2_ref, atol=2e-3, rtol=2e-3), \
        float(jnp.max(jnp.abs(y2 - y2_ref)))

    # bf16 matmul-operand path (recommended on v6e/v7x); loose tolerance.
    y3 = jax.block_until_ready(mtlp_forward(x2, params, matmul_dtype=jnp.bfloat16))
    assert y3.shape == (B2, 1)
    assert bool(jnp.all(jnp.isfinite(y3)))
    assert jnp.allclose(y3, y2_ref, atol=5e-2, rtol=0.0), \
        float(jnp.max(jnp.abs(y3 - y2_ref)))

    print("KERNEL_OK")
</pallas_src>

<mosaic_0001>
module attributes {stable_mosaic.version = 11 : i64} {
  func.func @_mtlp_kernel(%arg0: i32, %arg1: memref<16x32xf32, #tpu.memory_space<vmem>>, %arg2: memref<32x32xf32, #tpu.memory_space<vmem>>, %arg3: memref<96x32xf32, #tpu.memory_space<vmem>>, %arg4: memref<32x8xf32, #tpu.memory_space<vmem>>, %arg5: memref<1x16xf32, #tpu.memory_space<vmem>>) attributes {dimension_semantics = [#tpu.dimension_semantics<parallel>], iteration_bounds = array<i64: 1>, scalar_prefetch = 0 : i64, scratch_operands = 0 : i64, tpu.core_type = #tpu.core_type<tc>, window_params = [{transform_indices = @transform_0, window_bounds = array<i64: 16, 32>}, {pipeline_mode = #tpu.pipeline_mode<synchronous>, transform_indices = @transform_1, window_bounds = array<i64: 32, 32>}, {pipeline_mode = #tpu.pipeline_mode<synchronous>, transform_indices = @transform_2, window_bounds = array<i64: 96, 32>}, {pipeline_mode = #tpu.pipeline_mode<synchronous>, transform_indices = @transform_3, window_bounds = array<i64: 32, 8>}, {transform_indices = @transform_4, window_bounds = array<i64: 1, 16>}]} {
    %c0 = arith.constant 0 : index
    %c0_0 = arith.constant 0 : index
    %0 = vector.load %arg2[%c0, %c0_0] : memref<32x32xf32, #tpu.memory_space<vmem>>, vector<32x32xf32>
    %c0_1 = arith.constant 0 : index
    %c0_2 = arith.constant 0 : index
    %1 = vector.load %arg1[%c0_1, %c0_2] : memref<16x32xf32, #tpu.memory_space<vmem>>, vector<16x32xf32>
    %cst = arith.constant dense<0.000000e+00> : vector<32x16xf32>
    %2 = tpu.matmul %0, %1, %cst {dimension_numbers = #tpu.dot_dimension_numbers<[1], [1], [0], [0], [0, 0, 1, 0], [], []>} : vector<32x32xf32>, vector<16x32xf32>, vector<32x16xf32> -> vector<32x16xf32>
    %c0_3 = arith.constant 0 : index
    %c0_4 = arith.constant 0 : index
    %3 = vector.load %arg4[%c0_3, %c0_4] : memref<32x8xf32, #tpu.memory_space<vmem>>, vector<32x1xf32>
    %4 = vector.broadcast %3 : vector<32x1xf32> to vector<32x16xf32>
    %5 = arith.addf %2, %4 : vector<32x16xf32>
    %cst_5 = arith.constant 0.000000e+00 : f32
    %6 = vector.broadcast %cst_5 : f32 to vector<32x16xf32>
    %7 = arith.maximumf %5, %6 : vector<32x16xf32>
    %c0_6 = arith.constant 0 : index
    %c0_7 = arith.constant 0 : index
    %8 = vector.load %arg3[%c0_6, %c0_7] : memref<96x32xf32, #tpu.memory_space<vmem>>, vector<32x32xf32>
    %cst_8 = arith.constant dense<0.000000e+00> : vector<32x16xf32>
    %9 = tpu.matmul %8, %7, %cst_8 {dimension_numbers = #tpu.dot_dimension_numbers<[1], [0], [0], [1], [0, 0, 1, 1], [], []>} : vector<32x32xf32>, vector<32x16xf32>, vector<32x16xf32> -> vector<32x16xf32>
    %c0_9 = arith.constant 0 : index
    %c1 = arith.constant 1 : index
    %10 = vector.load %arg4[%c0_9, %c1] : memref<32x8xf32, #tpu.memory_space<vmem>>, vector<32x1xf32>
    %11 = vector.broadcast %10 : vector<32x1xf32> to vector<32x16xf32>
    %12 = arith.addf %9, %11 : vector<32x16xf32>
    %cst_10 = arith.constant 0.00999999977 : f32
    %13 = vector.broadcast %cst_10 : f32 to vector<32x16xf32>
    %14 = arith.mulf %13, %12 : vector<32x16xf32>
    %15 = arith.maximumf %12, %14 : vector<32x16xf32>
    %c32 = arith.constant 32 : index
    %c0_11 = arith.constant 0 : index
    %16 = vector.load %arg3[%c32, %c0_11] : memref<96x32xf32, #tpu.memory_space<vmem>>, vector<32x32xf32>
    %cst_12 = arith.constant dense<0.000000e+00> : vector<32x16xf32>
    %17 = tpu.matmul %16, %15, %cst_12 {dimension_numbers = #tpu.dot_dimension_numbers<[1], [0], [0], [1], [0, 0, 1, 1], [], []>} : vector<32x32xf32>, vector<32x16xf32>, vector<32x16xf32> -> vector<32x16xf32>
    %c0_13 = arith.constant 0 : index
    %c2 = arith.constant 2 : index
    %18 = vector.load %arg4[%c0_13, %c2] : memref<32x8xf32, #tpu.memory_space<vmem>>, vector<32x1xf32>
    %19 = vector.broadcast %18 : vector<32x1xf32> to vector<32x16xf32>
    %20 = arith.addf %17, %19 : vector<32x16xf32>
    %cst_14 = arith.constant 0.00999999977 : f32
    %21 = vector.broadcast %cst_14 : f32 to vector<32x16xf32>
    %22 = arith.mulf %21, %20 : vector<32x16xf32>
    %23 = arith.maximumf %20, %22 : vector<32x16xf32>
    %c64 = arith.constant 64 : index
    %c0_15 = arith.constant 0 : index
    %24 = vector.load %arg3[%c64, %c0_15] : memref<96x32xf32, #tpu.memory_space<vmem>>, vector<32x32xf32>
    %cst_16 = arith.constant dense<0.000000e+00> : vector<32x16xf32>
    %25 = tpu.matmul %24, %23, %cst_16 {dimension_numbers = #tpu.dot_dimension_numbers<[1], [0], [0], [1], [0, 0, 1, 1], [], []>} : vector<32x32xf32>, vector<32x16xf32>, vector<32x16xf32> -> vector<32x16xf32>
    %c0_17 = arith.constant 0 : index
    %c3 = arith.constant 3 : index
    %26 = vector.load %arg4[%c0_17, %c3] : memref<32x8xf32, #tpu.memory_space<vmem>>, vector<32x1xf32>
    %27 = vector.broadcast %26 : vector<32x1xf32> to vector<32x16xf32>
    %28 = arith.addf %25, %27 : vector<32x16xf32>
    %cst_18 = arith.constant 0.00999999977 : f32
    %29 = vector.broadcast %cst_18 : f32 to vector<32x16xf32>
    %30 = arith.mulf %29, %28 : vector<32x16xf32>
    %31 = arith.maximumf %28, %30 : vector<32x16xf32>
    %c0_19 = arith.constant 0 : index
    %c4 = arith.constant 4 : index
    %32 = vector.load %arg4[%c0_19, %c4] : memref<32x8xf32, #tpu.memory_space<vmem>>, vector<32x1xf32>
    %33 = vector.broadcast %32 : vector<32x1xf32> to vector<32x16xf32>
    %34 = arith.mulf %31, %33 : vector<32x16xf32>
    %cst_20 = arith.constant dense<0.000000e+00> : vector<16xf32>
    %35 = vector.multi_reduction <add>, %34, %cst_20 [0] : vector<32x16xf32> to vector<16xf32>
    %36 = vector.shape_cast %35 : vector<16xf32> to vector<1x16xf32>
    %c0_21 = arith.constant 0 : index
    %c5 = arith.constant 5 : index
    %37 = vector.load %arg4[%c0_21, %c5] : memref<32x8xf32, #tpu.memory_space<vmem>>, vector<1x1xf32>
    %38 = vector.broadcast %37 : vector<1x1xf32> to vector<1x16xf32>
    %39 = arith.addf %36, %38 : vector<1x16xf32>
    %cst_22 = arith.constant 0.000000e+00 : f32
    %40 = vector.broadcast %cst_22 : f32 to vector<1x16xf32>
    %41 = arith.subf %40, %39 : vector<1x16xf32>
    %42 = math.exp %41 : vector<1x16xf32>
    %cst_23 = arith.constant 1.000000e+00 : f32
    %43 = vector.broadcast %cst_23 : f32 to vector<1x16xf32>
    %44 = arith.addf %43, %42 : vector<1x16xf32>
    %45 = tpu.reciprocal %44 : vector<1x16xf32> -> vector<1x16xf32>
    %c0_24 = arith.constant 0 : index
    %c0_25 = arith.constant 0 : index
    %46 = vector.load %arg5[%c0_24, %c0_25] : memref<1x16xf32, #tpu.memory_space<vmem>>, vector<1x16xf32>
    tpu.vector_store %arg5[%c0_24, %c0_25], %45 {strides = array<i32>} : memref<1x16xf32, #tpu.memory_space<vmem>>, vector<1x16xf32>,
    return
  }
  func.func @transform_0(%arg0: i32) -> (i32, i32) {
    %c0_i32 = arith.constant 0 : i32
    %c0_i32_0 = arith.constant 0 : i32
    return %arg0, %c0_i32 : i32, i32
  }
  func.func @transform_1(%arg0: i32) -> (i32, i32) {
    %c0_i32 = arith.constant 0 : i32
    %c0_i32_0 = arith.constant 0 : i32
    %c0_i32_1 = arith.constant 0 : i32
    return %c0_i32, %c0_i32_0 : i32, i32
  }
  func.func @transform_2(%arg0: i32) -> (i32, i32) {
    %c0_i32 = arith.constant 0 : i32
    %c0_i32_0 = arith.constant 0 : i32
    %c0_i32_1 = arith.constant 0 : i32
    return %c0_i32, %c0_i32_0 : i32, i32
  }
  func.func @transform_3(%arg0: i32) -> (i32, i32) {
    %c0_i32 = arith.constant 0 : i32
    %c0_i32_0 = arith.constant 0 : i32
    %c0_i32_1 = arith.constant 0 : i32
    return %c0_i32, %c0_i32_0 : i32, i32
  }
  func.func @transform_4(%arg0: i32) -> (i32, i32) {
    %c0_i32 = arith.constant 0 : i32
    %c0_i32_0 = arith.constant 0 : i32
    return %c0_i32, %arg0 : i32, i32
  }
}

</mosaic_0001>

<llo_original>
// kernel: mtlp_forward.1
$region0: #{mtlp_forward.1}
  #allocation0 [shape = 'u32[]', space=smem, size = 0x4, offset = 0x4, fixed_abs, tag = 'smem constant byte address 0x4 - core index']
  #allocation1 [shape = 'u32[144,128]{1,0:T(1,128)}', space=vmem, size = 0x12000, scoped, tag = 'internal scratch']
  %s0 = inlined_call_operand.hbm [shape: f32[16,32], index: 0, kind: input, shape index: {}]
  %s1 = inlined_call_operand.hbm [shape: f32[32,32], index: 1, kind: input, shape index: {}]
  %s2 = inlined_call_operand.hbm [shape: f32[96,32], index: 2, kind: input, shape index: {}]
  %s3 = inlined_call_operand.hbm [shape: f32[32,8], index: 3, kind: input, shape index: {}]
  %s4 = inlined_call_operand.hbm [shape: f32[1,16], index: 4, kind: output, shape index: {}]
  %s5 = sld [smem:[#allocation0]]
  $region42: #{mtlp_forward.1} parent=0
    _
  %s7 = ssub.s32 1, %s5
  %s8 = scalar_select 0, %s7, %s5
  $region1: #{mtlp_forward.1} parent=0
    #allocation2 [shape = 'u8[8192]{0}', space=vmem, size = 0x2000, scoped, tag = 'input window, operand 0, single buffered']
    #allocation3 [shape = 's32[1]{0}', space=sflag, size = 0x4, scoped, tag = 'scoped memory for mtlp_forward.1']
    #allocation4 [shape = 's32[1]{0}', space=sflag, size = 0x4, scoped, tag = 'scoped memory for mtlp_forward.1']
    #allocation5 [shape = 'u8[16384]{0}', space=vmem, size = 0x4000, scoped, tag = 'input window, operand 1, single buffered']
    #allocation6 [shape = 's32[1]{0}', space=sflag, size = 0x4, scoped, tag = 'scoped memory for mtlp_forward.1']
    #allocation7 [shape = 'u8[49152]{0}', space=vmem, size = 0xc000, scoped, tag = 'input window, operand 2, single buffered']
    #allocation8 [shape = 'u8[16384]{0}', space=vmem, size = 0x4000, scoped, tag = 'input window, operand 3, single buffered']
    #allocation9 [shape = 's32[1]{0}', space=sflag, size = 0x4, scoped, tag = 'scoped memory for mtlp_forward.1']
    #allocation10 [shape = 'u8[512]{0}', space=vmem, size = 0x400, scoped, tag = 'output window, operand 0, single buffered']
    %9 = vsyncpa [#allocation3], 0
    %10 = vsyncpa [#allocation6], 0
    %11 = vsyncpa [#allocation9], 0
    %12 = vsyncpa [#allocation4], 0
    // Predicated region
    $region2: #{mtlp_forward.1} parent=1 // pred_check
      _
    $region3: #{mtlp_forward.1} parent=1 // pred_check_branch
      %14 = sbr.rel (0) target = $region5
    $region4: #{mtlp_forward.1} parent=1 // pred_region
      %s16 = ssub.s32 256, 256
      %17 = vsyncadd [#allocation3], %s16
      %s18 = sshll.u32 [#allocation2], 4
      %s19 = int_to_ptr.vmem [resolvable:$true] %s18
      %24 = dma.hbm_to_vmem [thread:$0]  %s0, 256, %s19, [#allocation3], 128, 128, 8
    $region5: #{mtlp_forward.1} parent=1 // pred_fallthru
      _
    // Predicated region
    $region6: #{mtlp_forward.1} parent=1 // pred_check
      _
    $region7: #{mtlp_forward.1} parent=1 // pred_check_branch
      %26 = sbr.rel (0) target = $region9
    $region8: #{mtlp_forward.1} parent=1 // pred_region
      %s28 = ssub.s32 512, 512
      %29 = vsyncadd [#allocation6], %s28
      %s30 = sshll.u32 [#allocation5], 4
      %s31 = int_to_ptr.vmem [resolvable:$true] %s30
      %36 = dma.hbm_to_vmem [thread:$0]  %s1, 512, %s31, [#allocation6], 128, 128, 8
    $region9: #{mtlp_forward.1} parent=1 // pred_fallthru
      _
    // Predicated region
    $region10: #{mtlp_forward.1} parent=1 // pred_check
      _
    $region11: #{mtlp_forward.1} parent=1 // pred_check_branch
      %38 = sbr.rel (0) target = $region13
    $region12: #{mtlp_forward.1} parent=1 // pred_region
      %s40 = ssub.s32 1536, 1536
      %41 = vsyncadd [#allocation6], %s40
      %s42 = sshll.u32 [#allocation7], 4
      %s43 = int_to_ptr.vmem [resolvable:$true] %s42
      %48 = dma.hbm_to_vmem [thread:$0]  %s2, 1536, %s43, [#allocation6], 128, 128, 8
    $region13: #{mtlp_forward.1} parent=1 // pred_fallthru
      _
    // Predicated region
    $region14: #{mtlp_forward.1} parent=1 // pred_check
      _
    $region15: #{mtlp_forward.1} parent=1 // pred_check_branch
      %50 = sbr.rel (0) target = $region17
    $region16: #{mtlp_forward.1} parent=1 // pred_region
      %s52 = ssub.s32 512, 512
      %53 = vsyncadd [#allocation9], %s52
      %s54 = sshll.u32 [#allocation8], 4
      %s55 = int_to_ptr.vmem [resolvable:$true] %s54
      %60 = dma.hbm_to_vmem [thread:$0]  %s3, 512, %s55, [#allocation9], 128, 128, 8
    $region17: #{mtlp_forward.1} parent=1 // pred_fallthru
      _
    // Predicated region
    $region18: #{mtlp_forward.1} parent=1 // pred_check
      _
    $region19: #{mtlp_forward.1} parent=1 // pred_check_branch
      %62 = sbr.rel (0) target = $region21
    $region20: #{mtlp_forward.1} parent=1 // pred_region
      %63 = dma.done [#allocation3], 256
    $region21: #{mtlp_forward.1} parent=1 // pred_fallthru
      _
    // Predicated region
    $region22: #{mtlp_forward.1} parent=1 // pred_check
      _
    $region23: #{mtlp_forward.1} parent=1 // pred_check_branch
      %65 = sbr.rel (0) target = $region25
    $region24: #{mtlp_forward.1} parent=1 // pred_region
      %66 = dma.done [#allocation6], 512
    $region25: #{mtlp_forward.1} parent=1 // pred_fallthru
      _
    // Predicated region
    $region26: #{mtlp_forward.1} parent=1 // pred_check
      _
    $region27: #{mtlp_forward.1} parent=1 // pred_check_branch
      %68 = sbr.rel (0) target = $region29
    $region28: #{mtlp_forward.1} parent=1 // pred_region
      %69 = dma.done [#allocation6], 1536
    $region29: #{mtlp_forward.1} parent=1 // pred_fallthru
      _
    // Predicated region
    $region30: #{mtlp_forward.1} parent=1 // pred_check
      _
    $region31: #{mtlp_forward.1} parent=1 // pred_check_branch
      %71 = sbr.rel (0) target = $region33
    $region32: #{mtlp_forward.1} parent=1 // pred_region
      %72 = dma.done [#allocation9], 512
    $region33: #{mtlp_forward.1} parent=1 // pred_fallthru
      _
    %v73 = vld [vmem:[#allocation5] sm:$0xff]
    %v74 = vld [vmem:[#allocation5 + $0x8] sm:$0xff]
    %v75 = vld [vmem:[#allocation5 + $0x10] sm:$0xff]
    %v76 = vld [vmem:[#allocation5 + $0x18] sm:$0xff]
    %v77 = vld [vmem:[#allocation2] sm:$0xff]
    %v78 = vld [vmem:[#allocation2 + $0x8] sm:$0xff]
    %v79 = vld [vmem:[#allocation8] sm:$0xff]
    %v80 = vld [vmem:[#allocation8 + $0x8] sm:$0xff]
    %v81 = vld [vmem:[#allocation8 + $0x10] sm:$0xff]
    %v82 = vld [vmem:[#allocation8 + $0x18] sm:$0xff]
    %84 = vset.pattern.permute.xlu0 0
    %85 = vperm.xlu0 %84, %v79
    %v86 = vpop.permute.xlu0 %85
    %89 = vset.pattern.permute.xlu0 0
    %90 = vperm.xlu0 %89, %v80
    %v91 = vpop.permute.xlu0 %90
    %94 = vset.pattern.permute.xlu0 0
    %95 = vperm.xlu0 %94, %v81
    %v96 = vpop.permute.xlu0 %95
    %99 = vset.pattern.permute.xlu0 0
    %100 = vperm.xlu0 %99, %v82
    %v101 = vpop.permute.xlu0 %100
    %vm103 = vcmask 261120
    %v105 = vsel %vm103, %v73, 0
    %v108 = vsel %vm103, %v74, 0
    %v111 = vsel %vm103, %v75, 0
    %v114 = vsel %vm103, %v76, 0
    %v117 = vsel %vm103, %v77, 0
    %v120 = vsel %vm103, %v78, 0
    %122 = vmatprep.subr.mxu0 0.0
    %123 = vmatpush1.xpose.msra.mxu0 %v117
    %124 = vmatprep.subr.mxu0 0.0
    %125 = vmatpush1.xpose.msra.mxu0 %v120
    %126 = vmatprep.subr.mxu0 0.0
    %127 = vmatpush1.xpose.msra.mxu0 0.0
    %128 = vmatprep.subr.mxu0 0.0
    %129 = vmatpush1.xpose.msra.mxu0 0.0
    %130 = vmatprep.subr.mxu0 0.0
    %131 = vmatpush1.xpose.msra.mxu0 0.0
    %132 = vmatprep.subr.mxu0 0.0
    %133 = vmatpush1.xpose.msra.mxu0 0.0
    %134 = vmatprep.subr.mxu0 0.0
    %135 = vmatpush1.xpose.msra.mxu0 0.0
    %136 = vmatprep.subr.mxu0 0.0
    %137 = vmatpush1.xpose.msra.mxu0 0.0
    %138 = vmatprep.subr.mxu0 0.0
    %139 = vmatpush1.xpose.msra.mxu0 0.0
    %140 = vmatprep.subr.mxu0 0.0
    %141 = vmatpush1.xpose.msra.mxu0 0.0
    %142 = vmatprep.subr.mxu0 0.0
    %143 = vmatpush1.xpose.msra.mxu0 0.0
    %144 = vmatprep.subr.mxu0 0.0
    %145 = vmatpush1.xpose.msra.mxu0 0.0
    %146 = vmatprep.subr.mxu0 0.0
    %147 = vmatpush1.xpose.msra.mxu0 0.0
    %148 = vmatprep.subr.mxu0 0.0
    %149 = vmatpush1.xpose.msra.mxu0 0.0
    %150 = vmatprep.subr.mxu0 0.0
    %151 = vmatpush1.xpose.msra.mxu0 0.0
    %152 = vmatprep.subr.mxu0 0.0
    %153 = vmatpush1.xpose.msra.mxu0 0.0
    %154 = vmatprep.subr.mxu0 0.0
    %155 = vmatpush1.xpose.msra.mxu0 0.0
    %156 = vmatprep.subr.mxu0 0.0
    %157 = vmatpush1.xpose.msra.mxu0 0.0
    %158 = vmatprep.subr.mxu0 0.0
    %159 = vmatpush1.xpose.msra.mxu0 0.0
    %160 = vmatprep.subr.mxu0 0.0
    %161 = vmatpush1.xpose.msra.mxu0 0.0
    %162 = vmatprep.subr.mxu0 0.0
    %163 = vmatpush1.xpose.msra.mxu0 0.0
    %164 = vmatprep.subr.mxu0 0.0
    %165 = vmatpush1.xpose.msra.mxu0 0.0
    %166 = vmatprep.subr.mxu0 0.0
    %167 = vmatpush1.xpose.msra.mxu0 0.0
    %168 = vmatprep.subr.mxu0 0.0
    %169 = vmatpush1.xpose.msra.mxu0 0.0
    %170 = vmatprep.subr.mxu0 0.0
    %171 = vmatpush1.xpose.msra.mxu0 0.0
    %172 = vmatprep.subr.mxu0 0.0
    %173 = vmatpush1.xpose.msra.mxu0 0.0
    %174 = vmatprep.subr.mxu0 0.0
    %175 = vmatpush1.xpose.msra.mxu0 0.0
    %176 = vmatprep.subr.mxu0 0.0
    %177 = vmatpush1.xpose.msra.mxu0 0.0
    %178 = vmatprep.subr.mxu0 0.0
    %179 = vmatpush1.xpose.msra.mxu0 0.0
    %180 = vmatprep.subr.mxu0 0.0
    %181 = vmatpush1.xpose.msra.mxu0 0.0
    %182 = vmatprep.subr.mxu0 0.0
    %183 = vmatpush1.xpose.msra.mxu0 0.0
    %184 = vmatprep.subr.mxu0 0.0
    %185 = vmatpush1.xpose.msra.mxu0 0.0
    %186 = vmatprep.mubr.f32.mxu0 0.0
    %187 = vmatmul.mubr.f32.gmra.mrb[0].mxu0 %v105
    %v188 = vpop.f32.mrb[0].mxu0
    %v189 = vadd.f32 %v86, %v188
    %v190 = vpop.f32.mrb[0].mxu0
    %191 = vmatprep.mubr.f32.mxu0 0.0
    %192 = vmatmul.mubr.f32.gmra.mrb[0].mxu0 %v108
    %v193 = vpop.f32.mrb[0].mxu0
    %v194 = vadd.f32 %v91, %v193
    %v195 = vpop.f32.mrb[0].mxu0
    %196 = vmatprep.mubr.f32.mxu0 0.0
    %197 = vmatmul.mubr.f32.gmra.mrb[0].mxu0 %v111
    %v198 = vpop.f32.mrb[0].mxu0
    %v199 = vadd.f32 %v96, %v198
    %v200 = vpop.f32.mrb[0].mxu0
    %201 = vmatprep.mubr.f32.mxu0 0.0
    %202 = vmatmul.mubr.f32.gmra.mrb[0].mxu0 %v114
    %v203 = vpop.f32.mrb[0].mxu0
    %v204 = vadd.f32 %v101, %v203
    %v205 = vpop.f32.mrb[0].mxu0
    %206 = vdwg.mxu0
    %v207 = vmax.f32 %v189, 0.0
    %v208 = vmax.f32 %v194, 0.0
    %v209 = vmax.f32 %v199, 0.0
    %v210 = vmax.f32 %v204, 0.0
    %v211 = vld [vmem:[#allocation7] sm:$0xff]
    %v212 = vld [vmem:[#allocation7 + $0x8] sm:$0xff]
    %v213 = vld [vmem:[#allocation7 + $0x10] sm:$0xff]
    %v214 = vld [vmem:[#allocation7 + $0x18] sm:$0xff]
    %215 = vset.pattern.permute.xlu0 1
    %216 = vperm.xlu0 %215, %v79
    %v217 = vpop.permute.xlu0 %216
    %219 = vset.pattern.permute.xlu0 1
    %220 = vperm.xlu0 %219, %v80
    %v221 = vpop.permute.xlu0 %220
    %223 = vset.pattern.permute.xlu0 1
    %224 = vperm.xlu0 %223, %v81
    %v225 = vpop.permute.xlu0 %224
    %227 = vset.pattern.permute.xlu0 1
    %228 = vperm.xlu0 %227, %v82
    %v229 = vpop.permute.xlu0 %228
    %v232 = vsel %vm103, %v211, 0
    %v235 = vsel %vm103, %v212, 0
    %v238 = vsel %vm103, %v213, 0
    %v241 = vsel %vm103, %v214, 0
    %243 = vmatprep.subr.mxu0 0.0
    %244 = vmatpush1.msra.mxu0 %v207
    %245 = vmatprep.subr.mxu0 0.0
    %246 = vmatpush1.msra.mxu0 %v208
    %247 = vmatprep.subr.mxu0 0.0
    %248 = vmatpush1.msra.mxu0 %v209
    %249 = vmatprep.subr.mxu0 0.0
    %250 = vmatpush1.msra.mxu0 %v210
    %251 = vmatprep.subr.mxu0 0.0
    %252 = vmatpush1.msra.mxu0 0.0
    %253 = vmatprep.subr.mxu0 0.0
    %254 = vmatpush1.msra.mxu0 0.0
    %255 = vmatprep.subr.mxu0 0.0
    %256 = vmatpush1.msra.mxu0 0.0
    %257 = vmatprep.subr.mxu0 0.0
    %258 = vmatpush1.msra.mxu0 0.0
    %259 = vmatprep.subr.mxu0 0.0
    %260 = vmatpush1.msra.mxu0 0.0
    %261 = vmatprep.subr.mxu0 0.0
    %262 = vmatpush1.msra.mxu0 0.0
    %263 = vmatprep.subr.mxu0 0.0
    %264 = vmatpush1.msra.mxu0 0.0
    %265 = vmatprep.subr.mxu0 0.0
    %266 = vmatpush1.msra.mxu0 0.0
    %267 = vmatprep.subr.mxu0 0.0
    %268 = vmatpush1.msra.mxu0 0.0
    %269 = vmatprep.subr.mxu0 0.0
    %270 = vmatpush1.msra.mxu0 0.0
    %271 = vmatprep.subr.mxu0 0.0
    %272 = vmatpush1.msra.mxu0 0.0
    %273 = vmatprep.subr.mxu0 0.0
    %274 = vmatpush1.msra.mxu0 0.0
    %275 = vmatprep.subr.mxu0 0.0
    %276 = vmatpush1.msra.mxu0 0.0
    %277 = vmatprep.subr.mxu0 0.0
    %278 = vmatpush1.msra.mxu0 0.0
    %279 = vmatprep.subr.mxu0 0.0
    %280 = vmatpush1.msra.mxu0 0.0
    %281 = vmatprep.subr.mxu0 0.0
    %282 = vmatpush1.msra.mxu0 0.0
    %283 = vmatprep.subr.mxu0 0.0
    %284 = vmatpush1.msra.mxu0 0.0
    %285 = vmatprep.subr.mxu0 0.0
    %286 = vmatpush1.msra.mxu0 0.0
    %287 = vmatprep.subr.mxu0 0.0
    %288 = vmatpush1.msra.mxu0 0.0
    %289 = vmatprep.subr.mxu0 0.0
    %290 = vmatpush1.msra.mxu0 0.0
    %291 = vmatprep.subr.mxu0 0.0
    %292 = vmatpush1.msra.mxu0 0.0
    %293 = vmatprep.subr.mxu0 0.0
    %294 = vmatpush1.msra.mxu0 0.0
    %295 = vmatprep.subr.mxu0 0.0
    %296 = vmatpush1.msra.mxu0 0.0
    %297 = vmatprep.subr.mxu0 0.0
    %298 = vmatpush1.msra.mxu0 0.0
    %299 = vmatprep.subr.mxu0 0.0
    %300 = vmatpush1.msra.mxu0 0.0
    %301 = vmatprep.subr.mxu0 0.0
    %302 = vmatpush1.msra.mxu0 0.0
    %303 = vmatprep.subr.mxu0 0.0
    %304 = vmatpush1.msra.mxu0 0.0
    %305 = vmatprep.subr.mxu0 0.0
    %306 = vmatpush1.msra.mxu0 0.0
    %307 = vmatprep.mubr.f32.mxu0 0.0
    %308 = vmatmul.mubr.f32.gmra.mrb[0].mxu0 %v232
    %v309 = vpop.f32.mrb[0].mxu0
    %v310 = vadd.f32 %v217, %v309
    %v311 = vpop.f32.mrb[0].mxu0
    %312 = vmatprep.mubr.f32.mxu0 0.0
    %313 = vmatmul.mubr.f32.gmra.mrb[0].mxu0 %v235
    %v314 = vpop.f32.mrb[0].mxu0
    %v315 = vadd.f32 %v221, %v314
    %v316 = vpop.f32.mrb[0].mxu0
    %317 = vmatprep.mubr.f32.mxu0 0.0
    %318 = vmatmul.mubr.f32.gmra.mrb[0].mxu0 %v238
    %v319 = vpop.f32.mrb[0].mxu0
    %v320 = vadd.f32 %v225, %v319
    %v321 = vpop.f32.mrb[0].mxu0
    %322 = vmatprep.mubr.f32.mxu0 0.0
    %323 = vmatmul.mubr.f32.gmra.mrb[0].mxu0 %v241
    %v324 = vpop.f32.mrb[0].mxu0
    %v325 = vadd.f32 %v229, %v324
    %v326 = vpop.f32.mrb[0].mxu0
    %327 = vdwg.mxu0
    %v328 = vmul.f32 %v310, 0.01
    %v329 = vmul.f32 %v315, 0.01
    %v330 = vmul.f32 %v320, 0.01
    %v331 = vmul.f32 %v325, 0.01
    %v332 = vmax.f32 %v310, %v328
    %v333 = vmax.f32 %v315, %v329
    %v334 = vmax.f32 %v320, %v330
    %v335 = vmax.f32 %v325, %v331
    %v336 = vld [vmem:[#allocation7 + $0x20] sm:$0xff]
    %v337 = vld [vmem:[#allocation7 + $0x28] sm:$0xff]
    %v338 = vld [vmem:[#allocation7 + $0x30] sm:$0xff]
    %v339 = vld [vmem:[#allocation7 + $0x38] sm:$0xff]
    %340 = vset.pattern.permute.xlu0 2
    %341 = vperm.xlu0 %340, %v79
    %v342 = vpop.permute.xlu0 %341
    %344 = vset.pattern.permute.xlu0 2
    %345 = vperm.xlu0 %344, %v80
    %v346 = vpop.permute.xlu0 %345
    %348 = vset.pattern.permute.xlu0 2
    %349 = vperm.xlu0 %348, %v81
    %v350 = vpop.permute.xlu0 %349
    %352 = vset.pattern.permute.xlu0 2
    %353 = vperm.xlu0 %352, %v82
    %v354 = vpop.permute.xlu0 %353
    %v357 = vsel %vm103, %v336, 0
    %v360 = vsel %vm103, %v337, 0
    %v363 = vsel %vm103, %v338, 0
    %v366 = vsel %vm103, %v339, 0
    %368 = vmatprep.subr.mxu0 0.0
    %369 = vmatpush1.msra.mxu0 %v332
    %370 = vmatprep.subr.mxu0 0.0
    %371 = vmatpush1.msra.mxu0 %v333
    %372 = vmatprep.subr.mxu0 0.0
    %373 = vmatpush1.msra.mxu0 %v334
    %374 = vmatprep.subr.mxu0 0.0
    %375 = vmatpush1.msra.mxu0 %v335
    %376 = vmatprep.subr.mxu0 0.0
    %377 = vmatpush1.msra.mxu0 0.0
    %378 = vmatprep.subr.mxu0 0.0
    %379 = vmatpush1.msra.mxu0 0.0
    %380 = vmatprep.subr.mxu0 0.0
    %381 = vmatpush1.msra.mxu0 0.0
    %382 = vmatprep.subr.mxu0 0.0
    %383 = vmatpush1.msra.mxu0 0.0
    %384 = vmatprep.subr.mxu0 0.0
    %385 = vmatpush1.msra.mxu0 0.0
    %386 = vmatprep.subr.mxu0 0.0
    %387 = vmatpush1.msra.mxu0 0.0
    %388 = vmatprep.subr.mxu0 0.0
    %389 = vmatpush1.msra.mxu0 0.0
    %390 = vmatprep.subr.mxu0 0.0
    %391 = vmatpush1.msra.mxu0 0.0
    %392 = vmatprep.subr.mxu0 0.0
    %393 = vmatpush1.msra.mxu0 0.0
    %394 = vmatprep.subr.mxu0 0.0
    %395 = vmatpush1.msra.mxu0 0.0
    %396 = vmatprep.subr.mxu0 0.0
    %397 = vmatpush1.msra.mxu0 0.0
    %398 = vmatprep.subr.mxu0 0.0
    %399 = vmatpush1.msra.mxu0 0.0
    %400 = vmatprep.subr.mxu0 0.0
    %401 = vmatpush1.msra.mxu0 0.0
    %402 = vmatprep.subr.mxu0 0.0
    %403 = vmatpush1.msra.mxu0 0.0
    %404 = vmatprep.subr.mxu0 0.0
    %405 = vmatpush1.msra.mxu0 0.0
    %406 = vmatprep.subr.mxu0 0.0
    %407 = vmatpush1.msra.mxu0 0.0
    %408 = vmatprep.subr.mxu0 0.0
    %409 = vmatpush1.msra.mxu0 0.0
    %410 = vmatprep.subr.mxu0 0.0
    %411 = vmatpush1.msra.mxu0 0.0
    %412 = vmatprep.subr.mxu0 0.0
    %413 = vmatpush1.msra.mxu0 0.0
    %414 = vmatprep.subr.mxu0 0.0
    %415 = vmatpush1.msra.mxu0 0.0
    %416 = vmatprep.subr.mxu0 0.0
    %417 = vmatpush1.msra.mxu0 0.0
    %418 = vmatprep.subr.mxu0 0.0
    %419 = vmatpush1.msra.mxu0 0.0
    %420 = vmatprep.subr.mxu0 0.0
    %421 = vmatpush1.msra.mxu0 0.0
    %422 = vmatprep.subr.mxu0 0.0
    %423 = vmatpush1.msra.mxu0 0.0
    %424 = vmatprep.subr.mxu0 0.0
    %425 = vmatpush1.msra.mxu0 0.0
    %426 = vmatprep.subr.mxu0 0.0
    %427 = vmatpush1.msra.mxu0 0.0
    %428 = vmatprep.subr.mxu0 0.0
    %429 = vmatpush1.msra.mxu0 0.0
    %430 = vmatprep.subr.mxu0 0.0
    %431 = vmatpush1.msra.mxu0 0.0
    %432 = vmatprep.mubr.f32.mxu0 0.0
    %433 = vmatmul.mubr.f32.gmra.mrb[0].mxu0 %v357
    %v434 = vpop.f32.mrb[0].mxu0
    %v435 = vadd.f32 %v342, %v434
    %v436 = vpop.f32.mrb[0].mxu0
    %437 = vmatprep.mubr.f32.mxu0 0.0
    %438 = vmatmul.mubr.f32.gmra.mrb[0].mxu0 %v360
    %v439 = vpop.f32.mrb[0].mxu0
    %v440 = vadd.f32 %v346, %v439
    %v441 = vpop.f32.mrb[0].mxu0
    %442 = vmatprep.mubr.f32.mxu0 0.0
    %443 = vmatmul.mubr.f32.gmra.mrb[0].mxu0 %v363
    %v444 = vpop.f32.mrb[0].mxu0
    %v445 = vadd.f32 %v350, %v444
    %v446 = vpop.f32.mrb[0].mxu0
    %447 = vmatprep.mubr.f32.mxu0 0.0
    %448 = vmatmul.mubr.f32.gmra.mrb[0].mxu0 %v366
    %v449 = vpop.f32.mrb[0].mxu0
    %v450 = vadd.f32 %v354, %v449
    %v451 = vpop.f32.mrb[0].mxu0
    %452 = vdwg.mxu0
    %v453 = vmul.f32 %v435, 0.01
    %v454 = vmul.f32 %v440, 0.01
    %v455 = vmul.f32 %v445, 0.01
    %v456 = vmul.f32 %v450, 0.01
    %v457 = vmax.f32 %v435, %v453
    %v458 = vmax.f32 %v440, %v454
    %v459 = vmax.f32 %v445, %v455
    %v460 = vmax.f32 %v450, %v456
    %v461 = vld [vmem:[#allocation7 + $0x40] sm:$0xff]
    %v462 = vld [vmem:[#allocation7 + $0x48] sm:$0xff]
    %v463 = vld [vmem:[#allocation7 + $0x50] sm:$0xff]
    %v464 = vld [vmem:[#allocation7 + $0x58] sm:$0xff]
    %465 = vset.pattern.permute.xlu0 3
    %466 = vperm.xlu0 %465, %v79
    %v467 = vpop.permute.xlu0 %466
    %469 = vset.pattern.permute.xlu0 3
    %470 = vperm.xlu0 %469, %v80
    %v471 = vpop.permute.xlu0 %470
    %473 = vset.pattern.permute.xlu0 3
    %474 = vperm.xlu0 %473, %v81
    %v475 = vpop.permute.xlu0 %474
    %477 = vset.pattern.permute.xlu0 3
    %478 = vperm.xlu0 %477, %v82
    %v479 = vpop.permute.xlu0 %478
    %v482 = vsel %vm103, %v461, 0
    %v485 = vsel %vm103, %v462, 0
    %v488 = vsel %vm103, %v463, 0
    %v491 = vsel %vm103, %v464, 0
    %493 = vmatprep.subr.mxu0 0.0
    %494 = vmatpush1.msra.mxu0 %v457
    %495 = vmatprep.subr.mxu0 0.0
    %496 = vmatpush1.msra.mxu0 %v458
    %497 = vmatprep.subr.mxu0 0.0
    %498 = vmatpush1.msra.mxu0 %v459
    %499 = vmatprep.subr.mxu0 0.0
    %500 = vmatpush1.msra.mxu0 %v460
    %501 = vmatprep.subr.mxu0 0.0
    %502 = vmatpush1.msra.mxu0 0.0
    %503 = vmatprep.subr.mxu0 0.0
    %504 = vmatpush1.msra.mxu0 0.0
    %505 = vmatprep.subr.mxu0 0.0
    %506 = vmatpush1.msra.mxu0 0.0
    %507 = vmatprep.subr.mxu0 0.0
    %508 = vmatpush1.msra.mxu0 0.0
    %509 = vmatprep.subr.mxu0 0.0
    %510 = vmatpush1.msra.mxu0 0.0
    %511 = vmatprep.subr.mxu0 0.0
    %512 = vmatpush1.msra.mxu0 0.0
    %513 = vmatprep.subr.mxu0 0.0
    %514 = vmatpush1.msra.mxu0 0.0
    %515 = vmatprep.subr.mxu0 0.0
    %516 = vmatpush1.msra.mxu0 0.0
    %517 = vmatprep.subr.mxu0 0.0
    %518 = vmatpush1.msra.mxu0 0.0
    %519 = vmatprep.subr.mxu0 0.0
    %520 = vmatpush1.msra.mxu0 0.0
    %521 = vmatprep.subr.mxu0 0.0
    %522 = vmatpush1.msra.mxu0 0.0
    %523 = vmatprep.subr.mxu0 0.0
    %524 = vmatpush1.msra.mxu0 0.0
    %525 = vmatprep.subr.mxu0 0.0
    %526 = vmatpush1.msra.mxu0 0.0
    %527 = vmatprep.subr.mxu0 0.0
    %528 = vmatpush1.msra.mxu0 0.0
    %529 = vmatprep.subr.mxu0 0.0
    %530 = vmatpush1.msra.mxu0 0.0
    %531 = vmatprep.subr.mxu0 0.0
    %532 = vmatpush1.msra.mxu0 0.0
    %533 = vmatprep.subr.mxu0 0.0
    %534 = vmatpush1.msra.mxu0 0.0
    %535 = vmatprep.subr.mxu0 0.0
    %536 = vmatpush1.msra.mxu0 0.0
    %537 = vmatprep.subr.mxu0 0.0
    %538 = vmatpush1.msra.mxu0 0.0
    %539 = vmatprep.subr.mxu0 0.0
    %540 = vmatpush1.msra.mxu0 0.0
    %541 = vmatprep.subr.mxu0 0.0
    %542 = vmatpush1.msra.mxu0 0.0
    %543 = vmatprep.subr.mxu0 0.0
    %544 = vmatpush1.msra.mxu0 0.0
    %545 = vmatprep.subr.mxu0 0.0
    %546 = vmatpush1.msra.mxu0 0.0
    %547 = vmatprep.subr.mxu0 0.0
    %548 = vmatpush1.msra.mxu0 0.0
    %549 = vmatprep.subr.mxu0 0.0
    %550 = vmatpush1.msra.mxu0 0.0
    %551 = vmatprep.subr.mxu0 0.0
    %552 = vmatpush1.msra.mxu0 0.0
    %553 = vmatprep.subr.mxu0 0.0
    %554 = vmatpush1.msra.mxu0 0.0
    %555 = vmatprep.subr.mxu0 0.0
    %556 = vmatpush1.msra.mxu0 0.0
    %557 = vmatprep.mubr.f32.mxu0 0.0
    %558 = vmatmul.mubr.f32.gmra.mrb[0].mxu0 %v482
    %v559 = vpop.f32.mrb[0].mxu0
    %v560 = vadd.f32 %v467, %v559
    %v561 = vpop.f32.mrb[0].mxu0
    %562 = vmatprep.mubr.f32.mxu0 0.0
    %563 = vmatmul.mubr.f32.gmra.mrb[0].mxu0 %v485
    %v564 = vpop.f32.mrb[0].mxu0
    %v565 = vadd.f32 %v471, %v564
    %v566 = vpop.f32.mrb[0].mxu0
    %567 = vmatprep.mubr.f32.mxu0 0.0
    %568 = vmatmul.mubr.f32.gmra.mrb[0].mxu0 %v488
    %v569 = vpop.f32.mrb[0].mxu0
    %v570 = vadd.f32 %v475, %v569
    %v571 = vpop.f32.mrb[0].mxu0
    %572 = vmatprep.mubr.f32.mxu0 0.0
    %573 = vmatmul.mubr.f32.gmra.mrb[0].mxu0 %v491
    %v574 = vpop.f32.mrb[0].mxu0
    %v575 = vadd.f32 %v479, %v574
    %v576 = vpop.f32.mrb[0].mxu0
    %577 = vdwg.mxu0
    %v578 = vmul.f32 %v560, 0.01
    %v579 = vmul.f32 %v565, 0.01
    %v580 = vmul.f32 %v570, 0.01
    %v581 = vmul.f32 %v575, 0.01
    %v582 = vmax.f32 %v560, %v578
    %v583 = vmax.f32 %v565, %v579
    %v584 = vmax.f32 %v570, %v580
    %v585 = vmax.f32 %v575, %v581
    %586 = vset.pattern.permute.xlu0 4
    %587 = vperm.xlu0 %586, %v79
    %v588 = vpop.permute.xlu0 %587
    %590 = vset.pattern.permute.xlu0 4
    %591 = vperm.xlu0 %590, %v80
    %v592 = vpop.permute.xlu0 %591
    %594 = vset.pattern.permute.xlu0 4
    %595 = vperm.xlu0 %594, %v81
    %v596 = vpop.permute.xlu0 %595
    %598 = vset.pattern.permute.xlu0 4
    %599 = vperm.xlu0 %598, %v82
    %v600 = vpop.permute.xlu0 %599
    %v602 = vmul.f32 %v582, %v588
    %v603 = vmul.f32 %v583, %v592
    %v604 = vmul.f32 %v584, %v596
    %v605 = vmul.f32 %v585, %v600
    %vm606 = vcmask 130048
    %v607 = vsel %vm606, %v602, 0.0
    %v608 = vsel %vm606, %v603, 0.0
    %v609 = vadd.f32 %v607, %v608
    %v610 = vsel %vm606, %v604, 0.0
    %v611 = vadd.f32 %v609, %v610
    %v612 = vsel %vm606, %v605, 0.0
    %v613 = vadd.f32 %v611, %v612
    %v614 = vrot.slane %v613, 4
    %v615 = vadd.f32 %v613, %v614
    %v616 = vrot.slane %v615, 2
    %v617 = vadd.f32 %v615, %v616
    %v618 = vrot.slane %v617, 1
    %v619 = vadd.f32 %v617, %v618
    %v620 = vld [vmem:[#allocation8] sm:$0x1]
    %622 = vset.pattern.permute.xlu0 5
    %623 = vperm.xlu0 %622, %v620
    %v624 = vpop.permute.xlu0 %623
    %v626 = vadd.f32 %v619, %v624
    %v627 = vsub.f32 0.0, %v626
    %v628 = vmul.f32 %v627, 1.442695
    %v629 = vpow.pop %v628
    %v630 = vadd.f32 %v629, 1.0
    %v631 = vrcp.pop %v630
    %vm632 = vcmask 122880
    %633 = vst.msk [vmem:[#allocation10] sm:$0x1] %vm632, %v631
    // Predicated region
    $region34: #{mtlp_forward.1} parent=1 // pred_check
      _
    $region35: #{mtlp_forward.1} parent=1 // pred_check_branch
      %635 = sbr.rel (0) target = $region37
    $region36: #{mtlp_forward.1} parent=1 // pred_region
      %s637 = ssub.s32 16, 16
      %638 = vsyncadd [#allocation4], %s637
      %s640 = sshll.u32 [#allocation10], 4
      %s641 = int_to_ptr.vmem [resolvable:$true] %s640
      %643 = dma.vmem_to_hbm [thread:$0]  %s641, 16, %s4, [#allocation4]
    $region37: #{mtlp_forward.1} parent=1 // pred_fallthru
      _
    // Predicated region
    $region38: #{mtlp_forward.1} parent=1 // pred_check
      _
    $region39: #{mtlp_forward.1} parent=1 // pred_check_branch
      %645 = sbr.rel (0) target = $region41
    $region40: #{mtlp_forward.1} parent=1 // pred_region
      %646 = dma.done [#allocation4], 16
    $region41: #{mtlp_forward.1} parent=1 // pred_fallthru
      _
    %647 = vsyncpa [#allocation3], 1
    %648 = vsyncpa [#allocation6], 1
    %649 = vsyncpa [#allocation9], 1
    %650 = vsyncpa [#allocation4], 1

</llo_original>
